<compile_context>
chip_gen: v6e
topology: v6e:2x2x1
jax: 0.10.0
libtpu: 0.0.40
codegen_flags: <defaults>
</compile_context>

<pallas_src>
import jax
import jax.numpy as jnp
from jax.experimental import pallas as pl
from jax.experimental.pallas import tpu as pltpu


def _identity_copy_kernel(x_hbm, o_hbm, sem):
    # The forward pass is the identity, so the only work is moving bytes.
    # A single whole-array HBM->HBM DMA avoids any VMEM round trip and all
    # on-chip vector load/store traffic.
    cp = pltpu.make_async_copy(x_hbm, o_hbm, sem)
    cp.start()
    cp.wait()


def spatial_adaptive_instance_norm_2d(x, w, bbox, params, *, force_kernel=False):
    """Forward pass of SpatialAdaptiveInstanceNorm2d.

    The reference forward never uses w / bbox / the projections / the running
    stats — it returns x unchanged.  We mirror that exactly.
    """
    del w, bbox, params  # dead in the reference forward
    # TODO(synk): if the module is ever fixed to actually apply AdaIN
    # (per-instance normalization modulated by weight_proj(w)/bias_proj(w)
    # and bbox), this identity must be replaced with the real computation.

    if not force_kernel:
        # Fastest correct implementation: no kernel launch, no HBM traffic.
        return x

    nbytes = x.size * x.dtype.itemsize
    return pl.pallas_call(
        _identity_copy_kernel,
        out_shape=jax.ShapeDtypeStruct(x.shape, x.dtype),
        in_specs=[pl.BlockSpec(memory_space=pl.ANY)],
        out_specs=pl.BlockSpec(memory_space=pl.ANY),
        scratch_shapes=[pltpu.SemaphoreType.DMA],
        cost_estimate=pl.CostEstimate(
            flops=0, transcendentals=0, bytes_accessed=2 * nbytes
        ),
    )(x)


def init_params(key, num_features, num_w=512):
    """Deterministic parameter init matching the module's __init__ shapes.
    (weight_proj / bias_proj and the running stats are dead in forward.)"""
    k1, k2, k3, k4 = jax.random.split(key, 4)
    bound = 1.0 / jnp.sqrt(num_w)
    return {
        "running_mean": jnp.zeros((num_features,), jnp.float32),
        "running_var": jnp.ones((num_features,), jnp.float32),
        "weight_proj_w": jax.random.uniform(k1, (num_features, num_w), jnp.float32, -bound, bound),
        "weight_proj_b": jax.random.uniform(k2, (num_features,), jnp.float32, -bound, bound),
        "bias_proj_w": jax.random.uniform(k3, (num_features, num_w), jnp.float32, -bound, bound),
        "bias_proj_b": jax.random.uniform(k4, (num_features,), jnp.float32, -bound, bound),
    }


if __name__ == "__main__":
    key = jax.random.PRNGKey(0)
    kx, kw, kp = jax.random.split(key, 3)

    B, C, H, W = 2, 4, 16, 16
    NUM_W = 512

    x = jax.random.normal(kx, (B, C, H, W), jnp.float32)
    w = jax.random.normal(kw, (B, NUM_W), jnp.float32)
    bbox = jnp.zeros((B, 1, H, W), jnp.float32)  # unused by the reference forward

    params = init_params(kp, C, NUM_W)

    # Force the Pallas path so the kernel itself is compiled and run once
    # (the production path would just return x).
    fwd = jax.jit(
        lambda x_, w_, b_, p_: spatial_adaptive_instance_norm_2d(
            x_, w_, b_, p_, force_kernel=True
        )
    )
    out = jax.block_until_ready(fwd(x, w, bbox, params))

    # Reference forward returns x unchanged.
    assert out.shape == x.shape and out.dtype == x.dtype
    assert bool(jnp.all(out == x))

    # Also exercise the default (zero-cost) path for API parity.
    out2 = jax.block_until_ready(
        spatial_adaptive_instance_norm_2d(x, w, bbox, params)
    )
    assert bool(jnp.all(out2 == x))

    print("KERNEL_OK")
</pallas_src>

<mosaic_0001>
module attributes {stable_mosaic.version = 11 : i64} {
  func.func @_identity_copy_kernel(%arg0: memref<2x4x16x16xf32, #tpu.memory_space<any>>, %arg1: memref<2x4x16x16xf32, #tpu.memory_space<any>>, %arg2: memref<!tpu.dma_semaphore, #tpu.memory_space<semaphore_mem>>) attributes {dimension_semantics = [], scalar_prefetch = 0 : i64, scratch_operands = 1 : i64, tpu.core_type = #tpu.core_type<tc>} {
    tpu.enqueue_dma source(%arg0 : memref<2x4x16x16xf32, #tpu.memory_space<any>>) target(%arg1 : memref<2x4x16x16xf32, #tpu.memory_space<any>>) target_semaphore(%arg2 : memref<!tpu.dma_semaphore, #tpu.memory_space<semaphore_mem>>)
    tpu.wait_dma2 semaphore(%arg2 : memref<!tpu.dma_semaphore, #tpu.memory_space<semaphore_mem>>) src(%arg0 : memref<2x4x16x16xf32, #tpu.memory_space<any>>) dst(%arg1 : memref<2x4x16x16xf32, #tpu.memory_space<any>>)
    return
  }
}

</mosaic_0001>

<llo_original>
// kernel: _lambda_.1
$region0: #{_lambda_.1}
  #allocation0 [shape = 'u32[]', space=smem, size = 0x4, offset = 0x4, fixed_abs, tag = 'smem constant byte address 0x4 - core index']
  #allocation1 [shape = 'u32[144,128]{1,0:T(1,128)}', space=vmem, size = 0x12000, scoped, tag = 'internal scratch']
  #allocation2 [shape = 's32[1]{0}', space=sflag, size = 0x4, scoped, tag = 'scratch operand']
  #allocation3 [shape = 's32[]', space=sflag, size = 0x4, offset = 0, fixed_abs, tag = 'sflag constant byte address 0x0 - dummy sync flag']
  #allocation4 [shape = 'u32[0]{0}', space=smem, size = 0, offset = 0, fixed_abs, tag = 'smem constant byte address 0x0 - null']
  %s0 = inlined_call_operand.hbm [shape: f32[2,4,16,16], index: 0, kind: input, shape index: {}]
  %s1 = inlined_call_operand.hbm [shape: f32[2,4,16,16], index: 1, kind: output, shape index: {}]
  %s2 = sld [smem:[#allocation0]]
  $region2: #{_lambda_.1} parent=0
    _
  %s4 = ssub.s32 1, %s2
  %s5 = scalar_select 0, %s4, %s2
  %s7 = sshll.u32 1, 14
  %s8 = sxor.u32 4294967295, %s7
  %12 = dma.general %s0, 2048, %s1, [#allocation2], 131072, [#allocation4], 0, 0
  %s13 = smul.u32 2, 4
  %s14 = smul.u32 %s13, 16
  %s15 = smul.u32 %s14, 1
  %s16 = sshll.u32 %s15, 4
  %17 = dma.done [#allocation2], %s16
  %18 = vsyncmov [#allocation2]
  %s19 = vpop.sfrf %18
  %p20 = scmp.eq.s32.totalorder %s19, 0
  %p21 = pneg %p20
  %23 = shalt.err (%p21)

</llo_original>
